<compile_context>
chip_gen: v7x
topology: tpu7x:2x2x1
jax: 0.10.0
libtpu: 0.0.40
codegen_flags: <defaults>
</compile_context>

<pallas_src>
import jax
import jax.numpy as jnp
from jax.experimental import pallas as pl
from jax.experimental.pallas import tpu as pltpu


# ----------------------------------------------------------------------------- kernel
def _make_cpc_kernel(B, T, H, R_np, lanes):
    """lanes = lane-dense (multiple-of-128) width shared by z / pred / output."""
    H3 = 3 * H

    def cpc_kernel(
        enc_in_ref,   # (R_np + T*B, C*W)   rows: [neg ; pos ; ctx windows (t-major)]
        enc_w_ref,    # (C*W, lanes)        encoder conv weight, lane-padded with zeros
        gru_w_ref,    # (lanes + H, 3H)     rows 0:lanes = W_ih [r|z|n] (zero-padded rows),
                      #                     rows lanes:lanes+H = W_hh [r|z|n]
        cls_w_ref,    # (H, lanes)          all classifier heads side by side, lane-padded
        bias_ref,     # (4, lanes)          rows: enc_b, b_ih, b_hh, cls_b (zero padded)
        out_ref,      # (R_np + B, lanes)   lane-dense packed output
    ):
        f32 = jnp.float32
        enc_b = bias_ref[0:1, :]           # (1, lanes), padded lanes are zero
        b_ih = bias_ref[1:2, 0:H3]         # (1, 3H)
        b_hh = bias_ref[2:3, 0:H3]         # (1, 3H)
        cls_b = bias_ref[3:4, :]           # (1, lanes), padded lanes are zero

        # ---- one fused encoder matmul over negatives, positives and all context windows ----
        z_all = jnp.dot(enc_in_ref[...], enc_w_ref[...],
                        preferred_element_type=f32) + enc_b          # (R_np + T*B, lanes)

        # encoded neg;pos rows go straight to the output slab (full-lane, unmasked store)
        out_ref[0:R_np, :] = z_all[0:R_np, :]

        # ---- GRU: input-side projections hoisted out of the recurrence ----
        z_ctx = z_all[R_np:R_np + T * B, :]                          # (T*B, lanes), pad cols = 0
        w_ih = gru_w_ref[0:lanes, :]                                 # (lanes, 3H), sublane-aligned split
        w_hh = gru_w_ref[lanes:lanes + H, :]                         # (H, 3H)
        gx_all = jnp.dot(z_ctx, w_ih, preferred_element_type=f32) + b_ih   # (T*B, 3H)

        h = jnp.zeros((B, H), f32)
        for t in range(T):   # static unroll; only the h-dependent matmul is serial
            gx = gx_all[t * B:(t + 1) * B, :]                        # (B, 3H)
            gh = jnp.dot(h, w_hh, preferred_element_type=f32) + b_hh
            r = jax.nn.sigmoid(gx[:, 0:H] + gh[:, 0:H])
            u = jax.nn.sigmoid(gx[:, H:2 * H] + gh[:, H:2 * H])
            n = jnp.tanh(gx[:, 2 * H:H3] + r * gh[:, 2 * H:H3])
            h = (1.0 - u) * n + u * h
        c_t = h                                                      # (B, H)

        # ---- all P classifier heads as a single matmul, lane-padded weights ----
        pred = jnp.dot(c_t, cls_w_ref[...], preferred_element_type=f32) + cls_b   # (B, lanes)
        out_ref[R_np:R_np + B, :] = pred                              # full-lane store

    return cpc_kernel


# ----------------------------------------------------------------------------- param fusion
def prepare_params(p):
    """One-time parameter fusion + lane-dense padding (done once, outside the forward)."""
    D = p["enc_w"].shape[1]
    H = p["whr"].shape[0]
    P = p["cls_w"].shape[0]
    PD = P * D
    lanes = 128 * (-(-max(D, PD) // 128))          # lane-dense width (multiple of 128)

    def pad_lanes(v, width):
        return jnp.pad(v, ((0, 0), (0, width - v.shape[1])))

    # encoder: lane-pad the output dim so the latent slab is already lane-dense
    enc_w = pad_lanes(p["enc_w"], lanes)                                  # (C*W, lanes)
    enc_b = pad_lanes(p["enc_b"], lanes)                                  # (1, lanes)

    # GRU: fuse gates; zero-pad W_ih rows so it consumes the lane-padded latent directly
    w_ih = jnp.concatenate([p["wir"], p["wiz"], p["win"]], axis=1)        # (D, 3H)
    w_ih = jnp.pad(w_ih, ((0, lanes - D), (0, 0)))                        # (lanes, 3H)
    w_hh = jnp.concatenate([p["whr"], p["whz"], p["whn"]], axis=1)        # (H, 3H)
    gru_w = jnp.concatenate([w_ih, w_hh], axis=0)                         # (lanes+H, 3H)
    b_ih = jnp.concatenate([p["bir"], p["biz"], p["bin"]], axis=1)        # (1, 3H)
    b_hh = jnp.concatenate([p["bhr"], p["bhz"], p["bhn"]], axis=1)        # (1, 3H)

    # classifier: all P heads side by side, lane-padded
    cls_w = pad_lanes(jnp.concatenate([p["cls_w"][i] for i in range(P)], axis=1), lanes)
    cls_b = pad_lanes(jnp.concatenate([p["cls_b"][i] for i in range(P)], axis=1), lanes)

    bias = jnp.concatenate(
        [enc_b, pad_lanes(b_ih, lanes), pad_lanes(b_hh, lanes), cls_b], axis=0)  # (4, lanes)

    return {"window": p["window"], "D": D, "H": H, "P": P, "lanes": lanes,
            "enc_w": enc_w, "gru_w": gru_w, "cls_w": cls_w, "bias": bias}


# ----------------------------------------------------------------------------- wrapper
def cpc_forward(x, neg_samples, pos_samples, fp):
    """x: (B, C, L), neg_samples: (B, Nneg, C, W), pos_samples: (B, Npos, C, W)."""
    B, C, L = x.shape
    W = fp["window"]
    T = L // W
    CW = C * W
    D, H, P, lanes = fp["D"], fp["H"], fp["P"], fp["lanes"]
    PD = P * D
    Nneg = neg_samples.shape[1]
    Npos = pos_samples.shape[1]
    R_np = B * (Nneg + Npos)

    # glue identical to the module: split x into T encoder windows, CombineDims([0,1]),
    # flatten each (C, W) window row-major (matching the flattened Conv1d weight).
    x_win = x.reshape(B, C, T, W).transpose(2, 0, 1, 3).reshape(T * B, CW)
    neg_flat = neg_samples.reshape(B * Nneg, CW)
    pos_flat = pos_samples.reshape(B * Npos, CW)
    enc_in = jnp.concatenate([neg_flat, pos_flat, x_win], axis=0)   # one encoder operand

    vmem = pl.BlockSpec(memory_space=pltpu.MemorySpace.VMEM)
    out = pl.pallas_call(
        _make_cpc_kernel(B, T, H, R_np, lanes),
        out_shape=jax.ShapeDtypeStruct((R_np + B, lanes), jnp.float32),
        in_specs=[vmem] * 5,
        out_specs=vmem,
    )(enc_in, fp["enc_w"], fp["gru_w"], fp["cls_w"], fp["bias"])

    # unpack the lane-dense slab (wrapper-side layout plumbing)
    z_samples = out[:R_np, :D]
    z_neg = z_samples[:B * Nneg].reshape(B, Nneg, D)     # .view((B, neg_samples_total, -1))
    z_pos = z_samples[B * Nneg:].reshape(B, Npos, D)     # .view((B, pos_samples, -1))
    z_pred = out[R_np:R_np + B, :PD].reshape(B, P, D)    # stack over heads + SwapDims([0,1])
    return {"z_pred": z_pred, "z_neg": z_neg, "z_pos": z_pos}


# ----------------------------------------------------------------------------- reference
def cpc_reference(x, neg_samples, pos_samples, params):
    B, C, L = x.shape
    W = params["window"]
    T = L // W
    CW = C * W
    enc_w, enc_b = params["enc_w"], params["enc_b"]
    Nneg, Npos = neg_samples.shape[1], pos_samples.shape[1]

    x_win = x.reshape(B, C, T, W).transpose(2, 0, 1, 3).reshape(T, B, CW)
    z_neg = neg_samples.reshape(B * Nneg, CW) @ enc_w + enc_b
    z_pos = pos_samples.reshape(B * Npos, CW) @ enc_w + enc_b

    H = params["whr"].shape[0]
    h = jnp.zeros((B, H), jnp.float32)
    for t in range(T):
        z_t = x_win[t] @ enc_w + enc_b
        r = jax.nn.sigmoid(z_t @ params["wir"] + params["bir"] + h @ params["whr"] + params["bhr"])
        u = jax.nn.sigmoid(z_t @ params["wiz"] + params["biz"] + h @ params["whz"] + params["bhz"])
        n = jnp.tanh(z_t @ params["win"] + params["bin"] + r * (h @ params["whn"] + params["bhn"]))
        h = (1.0 - u) * n + u * h
    c_t = h

    P = params["cls_w"].shape[0]
    preds = jnp.stack([c_t @ params["cls_w"][p] + params["cls_b"][p][0] for p in range(P)], axis=0)
    z_pred = preds.transpose(1, 0, 2)
    D = enc_w.shape[1]
    return {"z_pred": z_pred,
            "z_neg": z_neg.reshape(B, Nneg, D),
            "z_pos": z_pos.reshape(B, Npos, D)}


# ----------------------------------------------------------------------------- main
if __name__ == "__main__":
    # Small shapes consistent with the module's forward.
    B, C, W = 2, 4, 16          # batch, channels, encoder window length
    T = 4                       # number of context windows -> x length = T * W
    D, H = 32, 32               # encoder latent dim, GRU hidden dim
    P = 2                       # pos_samples (number of classifier heads)
    NEG_PER_POS = 3
    NNEG = NEG_PER_POS * P      # self.neg_samples = neg * pos
    CW = C * W
    L = T * W

    key = jax.random.PRNGKey(0)
    keys = jax.random.split(key, 24)
    s = 0.1
    params = {
        "window": W,
        # encoder Conv1d(C, D, kernel=W, stride=W): weight (D, C, W) -> (C*W, D)
        "enc_w": (s * jax.random.normal(keys[0], (D, C, W))).reshape(D, CW).T.astype(jnp.float32),
        "enc_b": (s * jax.random.normal(keys[1], (1, D))).astype(jnp.float32),
        # GRU(D -> H)
        "wir": (s * jax.random.normal(keys[2], (D, H))).astype(jnp.float32),
        "wiz": (s * jax.random.normal(keys[3], (D, H))).astype(jnp.float32),
        "win": (s * jax.random.normal(keys[4], (D, H))).astype(jnp.float32),
        "whr": (s * jax.random.normal(keys[5], (H, H))).astype(jnp.float32),
        "whz": (s * jax.random.normal(keys[6], (H, H))).astype(jnp.float32),
        "whn": (s * jax.random.normal(keys[7], (H, H))).astype(jnp.float32),
        "bir": (s * jax.random.normal(keys[8], (1, H))).astype(jnp.float32),
        "biz": (s * jax.random.normal(keys[9], (1, H))).astype(jnp.float32),
        "bin": (s * jax.random.normal(keys[10], (1, H))).astype(jnp.float32),
        "bhr": (s * jax.random.normal(keys[11], (1, H))).astype(jnp.float32),
        "bhz": (s * jax.random.normal(keys[12], (1, H))).astype(jnp.float32),
        "bhn": (s * jax.random.normal(keys[13], (1, H))).astype(jnp.float32),
        # P classifier heads Linear(H -> D)
        "cls_w": (s * jax.random.normal(keys[14], (P, H, D))).astype(jnp.float32),
        "cls_b": (s * jax.random.normal(keys[15], (P, 1, D))).astype(jnp.float32),
    }

    x = jax.random.normal(keys[16], (B, C, L), dtype=jnp.float32)            # NCW
    neg = jax.random.normal(keys[17], (B, NNEG, C, W), dtype=jnp.float32)
    pos = jax.random.normal(keys[18], (B, P, C, W), dtype=jnp.float32)

    fparams = prepare_params(params)     # one-time parameter fusion + lane padding
    out = cpc_forward(x, neg, pos, fparams)
    jax.block_until_ready(out)

    ref = cpc_reference(x, neg, pos, params)
    for k in ("z_pred", "z_neg", "z_pos"):
        assert out[k].shape == ref[k].shape, (k, out[k].shape, ref[k].shape)
        assert jnp.allclose(out[k], ref[k], rtol=1e-4, atol=1e-4), k

    assert out["z_pred"].shape == (B, P, D)
    assert out["z_neg"].shape == (B, NNEG, D)
    assert out["z_pos"].shape == (B, P, D)

    # TODO(synk): aggregate_pred / convert_pred are host-side bookkeeping (list append,
    # numpy conversion) and intentionally not implemented as kernel work.
    print("KERNEL_OK")
</pallas_src>

<mosaic_0001>
module attributes {stable_mosaic.version = 11 : i64} {
  func.func @cpc_kernel(%arg0: memref<24x64xf32, #tpu.memory_space<vmem>>, %arg1: memref<64x128xf32, #tpu.memory_space<vmem>>, %arg2: memref<160x96xf32, #tpu.memory_space<vmem>>, %arg3: memref<32x128xf32, #tpu.memory_space<vmem>>, %arg4: memref<4x128xf32, #tpu.memory_space<vmem>>, %arg5: memref<18x128xf32, #tpu.memory_space<vmem>>) attributes {dimension_semantics = [], scalar_prefetch = 0 : i64, scratch_operands = 0 : i64, tpu.core_type = #tpu.core_type<tc>} {
    %c0 = arith.constant 0 : index
    %c0_0 = arith.constant 0 : index
    %0 = vector.load %arg4[%c0, %c0_0] : memref<4x128xf32, #tpu.memory_space<vmem>>, vector<1x128xf32>
    %c1 = arith.constant 1 : index
    %c0_1 = arith.constant 0 : index
    %1 = vector.load %arg4[%c1, %c0_1] : memref<4x128xf32, #tpu.memory_space<vmem>>, vector<1x96xf32>
    %c2 = arith.constant 2 : index
    %c0_2 = arith.constant 0 : index
    %2 = vector.load %arg4[%c2, %c0_2] : memref<4x128xf32, #tpu.memory_space<vmem>>, vector<1x96xf32>
    %c3 = arith.constant 3 : index
    %c0_3 = arith.constant 0 : index
    %3 = vector.load %arg4[%c3, %c0_3] : memref<4x128xf32, #tpu.memory_space<vmem>>, vector<1x128xf32>
    %c0_4 = arith.constant 0 : index
    %c0_5 = arith.constant 0 : index
    %4 = vector.load %arg0[%c0_4, %c0_5] : memref<24x64xf32, #tpu.memory_space<vmem>>, vector<24x64xf32>
    %c0_6 = arith.constant 0 : index
    %c0_7 = arith.constant 0 : index
    %5 = vector.load %arg1[%c0_6, %c0_7] : memref<64x128xf32, #tpu.memory_space<vmem>>, vector<64x128xf32>
    %cst = arith.constant dense<0.000000e+00> : vector<24x128xf32>
    %6 = tpu.matmul %4, %5, %cst {dimension_numbers = #tpu.dot_dimension_numbers<[1], [0], [0], [1], [0, 0, 1, 1], [], []>} : vector<24x64xf32>, vector<64x128xf32>, vector<24x128xf32> -> vector<24x128xf32>
    %7 = vector.broadcast %0 : vector<1x128xf32> to vector<24x128xf32>
    %8 = arith.addf %6, %7 : vector<24x128xf32>
    %9 = vector.extract_strided_slice %8 {offsets = [0, 0], sizes = [16, 128], strides = [1, 1]} : vector<24x128xf32> to vector<16x128xf32>
    %c0_8 = arith.constant 0 : index
    %c0_9 = arith.constant 0 : index
    %10 = vector.load %arg5[%c0_8, %c0_9] : memref<18x128xf32, #tpu.memory_space<vmem>>, vector<16x128xf32>
    tpu.vector_store %arg5[%c0_8, %c0_9], %9 {strides = array<i32>} : memref<18x128xf32, #tpu.memory_space<vmem>>, vector<16x128xf32>,
    %11 = vector.extract_strided_slice %8 {offsets = [16, 0], sizes = [8, 128], strides = [1, 1]} : vector<24x128xf32> to vector<8x128xf32>
    %c0_10 = arith.constant 0 : index
    %c0_11 = arith.constant 0 : index
    %12 = vector.load %arg2[%c0_10, %c0_11] : memref<160x96xf32, #tpu.memory_space<vmem>>, vector<128x96xf32>
    %c128 = arith.constant 128 : index
    %c0_12 = arith.constant 0 : index
    %13 = vector.load %arg2[%c128, %c0_12] : memref<160x96xf32, #tpu.memory_space<vmem>>, vector<32x96xf32>
    %cst_13 = arith.constant dense<0.000000e+00> : vector<8x96xf32>
    %14 = tpu.matmul %11, %12, %cst_13 {dimension_numbers = #tpu.dot_dimension_numbers<[1], [0], [0], [1], [0, 0, 1, 1], [], []>} : vector<8x128xf32>, vector<128x96xf32>, vector<8x96xf32> -> vector<8x96xf32>
    %15 = vector.broadcast %1 : vector<1x96xf32> to vector<8x96xf32>
    %16 = arith.addf %14, %15 : vector<8x96xf32>
    %cst_14 = arith.constant 0.000000e+00 : f32
    %17 = vector.broadcast %cst_14 : f32 to vector<2x32xf32>
    %18 = vector.extract_strided_slice %16 {offsets = [0, 0], sizes = [2, 96], strides = [1, 1]} : vector<8x96xf32> to vector<2x96xf32>
    %cst_15 = arith.constant dense<0.000000e+00> : vector<2x96xf32>
    %19 = tpu.matmul %17, %13, %cst_15 {dimension_numbers = #tpu.dot_dimension_numbers<[1], [0], [0], [1], [0, 0, 1, 1], [], []>} : vector<2x32xf32>, vector<32x96xf32>, vector<2x96xf32> -> vector<2x96xf32>
    %20 = vector.broadcast %2 : vector<1x96xf32> to vector<2x96xf32>
    %21 = arith.addf %19, %20 : vector<2x96xf32>
    %22 = vector.extract_strided_slice %18 {offsets = [0, 0], sizes = [2, 32], strides = [1, 1]} : vector<2x96xf32> to vector<2x32xf32>
    %23 = vector.extract_strided_slice %21 {offsets = [0, 0], sizes = [2, 32], strides = [1, 1]} : vector<2x96xf32> to vector<2x32xf32>
    %24 = arith.addf %22, %23 : vector<2x32xf32>
    %25 = arith.negf %24 : vector<2x32xf32>
    %26 = math.exp %25 : vector<2x32xf32>
    %cst_16 = arith.constant 1.000000e+00 : f32
    %27 = vector.broadcast %cst_16 : f32 to vector<2x32xf32>
    %28 = arith.addf %27, %26 : vector<2x32xf32>
    %29 = arith.divf %27, %28 : vector<2x32xf32>
    %30 = vector.extract_strided_slice %18 {offsets = [0, 32], sizes = [2, 32], strides = [1, 1]} : vector<2x96xf32> to vector<2x32xf32>
    %31 = vector.extract_strided_slice %21 {offsets = [0, 32], sizes = [2, 32], strides = [1, 1]} : vector<2x96xf32> to vector<2x32xf32>
    %32 = arith.addf %30, %31 : vector<2x32xf32>
    %33 = arith.negf %32 : vector<2x32xf32>
    %34 = math.exp %33 : vector<2x32xf32>
    %cst_17 = arith.constant 1.000000e+00 : f32
    %35 = vector.broadcast %cst_17 : f32 to vector<2x32xf32>
    %36 = arith.addf %35, %34 : vector<2x32xf32>
    %37 = arith.divf %35, %36 : vector<2x32xf32>
    %38 = vector.extract_strided_slice %18 {offsets = [0, 64], sizes = [2, 32], strides = [1, 1]} : vector<2x96xf32> to vector<2x32xf32>
    %39 = vector.extract_strided_slice %21 {offsets = [0, 64], sizes = [2, 32], strides = [1, 1]} : vector<2x96xf32> to vector<2x32xf32>
    %40 = arith.mulf %29, %39 : vector<2x32xf32>
    %41 = arith.addf %38, %40 : vector<2x32xf32>
    %42 = math.tanh %41 : vector<2x32xf32>
    %cst_18 = arith.constant 1.000000e+00 : f32
    %43 = vector.broadcast %cst_18 : f32 to vector<2x32xf32>
    %44 = arith.subf %43, %37 : vector<2x32xf32>
    %45 = arith.mulf %44, %42 : vector<2x32xf32>
    %46 = arith.mulf %37, %17 : vector<2x32xf32>
    %47 = arith.addf %45, %46 : vector<2x32xf32>
    %48 = vector.extract_strided_slice %16 {offsets = [2, 0], sizes = [2, 96], strides = [1, 1]} : vector<8x96xf32> to vector<2x96xf32>
    %cst_19 = arith.constant dense<0.000000e+00> : vector<2x96xf32>
    %49 = tpu.matmul %47, %13, %cst_19 {dimension_numbers = #tpu.dot_dimension_numbers<[1], [0], [0], [1], [0, 0, 1, 1], [], []>} : vector<2x32xf32>, vector<32x96xf32>, vector<2x96xf32> -> vector<2x96xf32>
    %50 = vector.broadcast %2 : vector<1x96xf32> to vector<2x96xf32>
    %51 = arith.addf %49, %50 : vector<2x96xf32>
    %52 = vector.extract_strided_slice %48 {offsets = [0, 0], sizes = [2, 32], strides = [1, 1]} : vector<2x96xf32> to vector<2x32xf32>
    %53 = vector.extract_strided_slice %51 {offsets = [0, 0], sizes = [2, 32], strides = [1, 1]} : vector<2x96xf32> to vector<2x32xf32>
    %54 = arith.addf %52, %53 : vector<2x32xf32>
    %55 = arith.negf %54 : vector<2x32xf32>
    %56 = math.exp %55 : vector<2x32xf32>
    %cst_20 = arith.constant 1.000000e+00 : f32
    %57 = vector.broadcast %cst_20 : f32 to vector<2x32xf32>
    %58 = arith.addf %57, %56 : vector<2x32xf32>
    %59 = arith.divf %57, %58 : vector<2x32xf32>
    %60 = vector.extract_strided_slice %48 {offsets = [0, 32], sizes = [2, 32], strides = [1, 1]} : vector<2x96xf32> to vector<2x32xf32>
    %61 = vector.extract_strided_slice %51 {offsets = [0, 32], sizes = [2, 32], strides = [1, 1]} : vector<2x96xf32> to vector<2x32xf32>
    %62 = arith.addf %60, %61 : vector<2x32xf32>
    %63 = arith.negf %62 : vector<2x32xf32>
    %64 = math.exp %63 : vector<2x32xf32>
    %cst_21 = arith.constant 1.000000e+00 : f32
    %65 = vector.broadcast %cst_21 : f32 to vector<2x32xf32>
    %66 = arith.addf %65, %64 : vector<2x32xf32>
    %67 = arith.divf %65, %66 : vector<2x32xf32>
    %68 = vector.extract_strided_slice %48 {offsets = [0, 64], sizes = [2, 32], strides = [1, 1]} : vector<2x96xf32> to vector<2x32xf32>
    %69 = vector.extract_strided_slice %51 {offsets = [0, 64], sizes = [2, 32], strides = [1, 1]} : vector<2x96xf32> to vector<2x32xf32>
    %70 = arith.mulf %59, %69 : vector<2x32xf32>
    %71 = arith.addf %68, %70 : vector<2x32xf32>
    %72 = math.tanh %71 : vector<2x32xf32>
    %cst_22 = arith.constant 1.000000e+00 : f32
    %73 = vector.broadcast %cst_22 : f32 to vector<2x32xf32>
    %74 = arith.subf %73, %67 : vector<2x32xf32>
    %75 = arith.mulf %74, %72 : vector<2x32xf32>
    %76 = arith.mulf %67, %47 : vector<2x32xf32>
    %77 = arith.addf %75, %76 : vector<2x32xf32>
    %78 = vector.extract_strided_slice %16 {offsets = [4, 0], sizes = [2, 96], strides = [1, 1]} : vector<8x96xf32> to vector<2x96xf32>
    %cst_23 = arith.constant dense<0.000000e+00> : vector<2x96xf32>
    %79 = tpu.matmul %77, %13, %cst_23 {dimension_numbers = #tpu.dot_dimension_numbers<[1], [0], [0], [1], [0, 0, 1, 1], [], []>} : vector<2x32xf32>, vector<32x96xf32>, vector<2x96xf32> -> vector<2x96xf32>
    %80 = vector.broadcast %2 : vector<1x96xf32> to vector<2x96xf32>
    %81 = arith.addf %79, %80 : vector<2x96xf32>
    %82 = vector.extract_strided_slice %78 {offsets = [0, 0], sizes = [2, 32], strides = [1, 1]} : vector<2x96xf32> to vector<2x32xf32>
    %83 = vector.extract_strided_slice %81 {offsets = [0, 0], sizes = [2, 32], strides = [1, 1]} : vector<2x96xf32> to vector<2x32xf32>
    %84 = arith.addf %82, %83 : vector<2x32xf32>
    %85 = arith.negf %84 : vector<2x32xf32>
    %86 = math.exp %85 : vector<2x32xf32>
    %cst_24 = arith.constant 1.000000e+00 : f32
    %87 = vector.broadcast %cst_24 : f32 to vector<2x32xf32>
    %88 = arith.addf %87, %86 : vector<2x32xf32>
    %89 = arith.divf %87, %88 : vector<2x32xf32>
    %90 = vector.extract_strided_slice %78 {offsets = [0, 32], sizes = [2, 32], strides = [1, 1]} : vector<2x96xf32> to vector<2x32xf32>
    %91 = vector.extract_strided_slice %81 {offsets = [0, 32], sizes = [2, 32], strides = [1, 1]} : vector<2x96xf32> to vector<2x32xf32>
    %92 = arith.addf %90, %91 : vector<2x32xf32>
    %93 = arith.negf %92 : vector<2x32xf32>
    %94 = math.exp %93 : vector<2x32xf32>
    %cst_25 = arith.constant 1.000000e+00 : f32
    %95 = vector.broadcast %cst_25 : f32 to vector<2x32xf32>
    %96 = arith.addf %95, %94 : vector<2x32xf32>
    %97 = arith.divf %95, %96 : vector<2x32xf32>
    %98 = vector.extract_strided_slice %78 {offsets = [0, 64], sizes = [2, 32], strides = [1, 1]} : vector<2x96xf32> to vector<2x32xf32>
    %99 = vector.extract_strided_slice %81 {offsets = [0, 64], sizes = [2, 32], strides = [1, 1]} : vector<2x96xf32> to vector<2x32xf32>
    %100 = arith.mulf %89, %99 : vector<2x32xf32>
    %101 = arith.addf %98, %100 : vector<2x32xf32>
    %102 = math.tanh %101 : vector<2x32xf32>
    %cst_26 = arith.constant 1.000000e+00 : f32
    %103 = vector.broadcast %cst_26 : f32 to vector<2x32xf32>
    %104 = arith.subf %103, %97 : vector<2x32xf32>
    %105 = arith.mulf %104, %102 : vector<2x32xf32>
    %106 = arith.mulf %97, %77 : vector<2x32xf32>
    %107 = arith.addf %105, %106 : vector<2x32xf32>
    %108 = vector.extract_strided_slice %16 {offsets = [6, 0], sizes = [2, 96], strides = [1, 1]} : vector<8x96xf32> to vector<2x96xf32>
    %cst_27 = arith.constant dense<0.000000e+00> : vector<2x96xf32>
    %109 = tpu.matmul %107, %13, %cst_27 {dimension_numbers = #tpu.dot_dimension_numbers<[1], [0], [0], [1], [0, 0, 1, 1], [], []>} : vector<2x32xf32>, vector<32x96xf32>, vector<2x96xf32> -> vector<2x96xf32>
    %110 = vector.broadcast %2 : vector<1x96xf32> to vector<2x96xf32>
    %111 = arith.addf %109, %110 : vector<2x96xf32>
    %112 = vector.extract_strided_slice %108 {offsets = [0, 0], sizes = [2, 32], strides = [1, 1]} : vector<2x96xf32> to vector<2x32xf32>
    %113 = vector.extract_strided_slice %111 {offsets = [0, 0], sizes = [2, 32], strides = [1, 1]} : vector<2x96xf32> to vector<2x32xf32>
    %114 = arith.addf %112, %113 : vector<2x32xf32>
    %115 = arith.negf %114 : vector<2x32xf32>
    %116 = math.exp %115 : vector<2x32xf32>
    %cst_28 = arith.constant 1.000000e+00 : f32
    %117 = vector.broadcast %cst_28 : f32 to vector<2x32xf32>
    %118 = arith.addf %117, %116 : vector<2x32xf32>
    %119 = arith.divf %117, %118 : vector<2x32xf32>
    %120 = vector.extract_strided_slice %108 {offsets = [0, 32], sizes = [2, 32], strides = [1, 1]} : vector<2x96xf32> to vector<2x32xf32>
    %121 = vector.extract_strided_slice %111 {offsets = [0, 32], sizes = [2, 32], strides = [1, 1]} : vector<2x96xf32> to vector<2x32xf32>
    %122 = arith.addf %120, %121 : vector<2x32xf32>
    %123 = arith.negf %122 : vector<2x32xf32>
    %124 = math.exp %123 : vector<2x32xf32>
    %cst_29 = arith.constant 1.000000e+00 : f32
    %125 = vector.broadcast %cst_29 : f32 to vector<2x32xf32>
    %126 = arith.addf %125, %124 : vector<2x32xf32>
    %127 = arith.divf %125, %126 : vector<2x32xf32>
    %128 = vector.extract_strided_slice %108 {offsets = [0, 64], sizes = [2, 32], strides = [1, 1]} : vector<2x96xf32> to vector<2x32xf32>
    %129 = vector.extract_strided_slice %111 {offsets = [0, 64], sizes = [2, 32], strides = [1, 1]} : vector<2x96xf32> to vector<2x32xf32>
    %130 = arith.mulf %119, %129 : vector<2x32xf32>
    %131 = arith.addf %128, %130 : vector<2x32xf32>
    %132 = math.tanh %131 : vector<2x32xf32>
    %cst_30 = arith.constant 1.000000e+00 : f32
    %133 = vector.broadcast %cst_30 : f32 to vector<2x32xf32>
    %134 = arith.subf %133, %127 : vector<2x32xf32>
    %135 = arith.mulf %134, %132 : vector<2x32xf32>
    %136 = arith.mulf %127, %107 : vector<2x32xf32>
    %137 = arith.addf %135, %136 : vector<2x32xf32>
    %c0_31 = arith.constant 0 : index
    %c0_32 = arith.constant 0 : index
    %138 = vector.load %arg3[%c0_31, %c0_32] : memref<32x128xf32, #tpu.memory_space<vmem>>, vector<32x128xf32>
    %cst_33 = arith.constant dense<0.000000e+00> : vector<2x128xf32>
    %139 = tpu.matmul %137, %138, %cst_33 {dimension_numbers = #tpu.dot_dimension_numbers<[1], [0], [0], [1], [0, 0, 1, 1], [], []>} : vector<2x32xf32>, vector<32x128xf32>, vector<2x128xf32> -> vector<2x128xf32>
    %140 = vector.broadcast %3 : vector<1x128xf32> to vector<2x128xf32>
    %141 = arith.addf %139, %140 : vector<2x128xf32>
    %c16 = arith.constant 16 : index
    %c0_34 = arith.constant 0 : index
    %142 = vector.load %arg5[%c16, %c0_34] : memref<18x128xf32, #tpu.memory_space<vmem>>, vector<2x128xf32>
    tpu.vector_store %arg5[%c16, %c0_34], %141 {strides = array<i32>} : memref<18x128xf32, #tpu.memory_space<vmem>>, vector<2x128xf32>,
    return
  }
}

</mosaic_0001>

<llo_original>
// kernel: tpu_custom_call.1
$region0: #{tpu_custom_call.1}
  #allocation0 [shape = 'u32[]', space=smem, size = 0x4, offset = 0x4, fixed_abs, tag = 'smem constant byte address 0x4 - core index']
  #allocation1 [shape = 'u32[144,128]{1,0:T(1,128)}', space=vmem, size = 0x12000, scoped, tag = 'internal scratch']
  %s0 = inlined_call_operand.hbm [shape: f32[24,64], index: 0, kind: input, shape index: {}]
  %s1 = inlined_call_operand.hbm [shape: f32[64,128], index: 1, kind: input, shape index: {}]
  %s2 = inlined_call_operand.hbm [shape: f32[160,96], index: 2, kind: input, shape index: {}]
  %s3 = inlined_call_operand.hbm [shape: f32[32,128], index: 3, kind: input, shape index: {}]
  %s4 = inlined_call_operand.vmem [shape: f32[4,128], index: 4, kind: input, shape index: {}]
  %s5 = inlined_call_operand.hbm [shape: f32[18,128], index: 5, kind: output, shape index: {}]
  %s6 = sld [smem:[#allocation0]]
  $region46: #{tpu_custom_call.1} parent=0
    _
  %s8 = ssub.s32 1, %s6
  %s9 = scalar_select 0, %s8, %s6
  $region1: #{tpu_custom_call.1} parent=0
    #allocation2 [shape = 'u8[12288]{0}', space=vmem, size = 0x3000, scoped, tag = 'input window, operand 0, single buffered']
    #allocation3 [shape = 's32[1]{0}', space=sflag, size = 0x4, scoped, tag = 'scoped memory for tpu_custom_call.1']
    #allocation4 [shape = 's32[1]{0}', space=sflag, size = 0x4, scoped, tag = 'scoped memory for tpu_custom_call.1']
    #allocation5 [shape = 'u8[32768]{0}', space=vmem, size = 0x8000, scoped, tag = 'input window, operand 1, single buffered']
    #allocation6 [shape = 's32[1]{0}', space=sflag, size = 0x4, scoped, tag = 'scoped memory for tpu_custom_call.1']
    #allocation7 [shape = 'u8[81920]{0}', space=vmem, size = 0x14000, scoped, tag = 'input window, operand 2, single buffered']
    #allocation8 [shape = 'u8[16384]{0}', space=vmem, size = 0x4000, scoped, tag = 'input window, operand 3, single buffered']
    #allocation9 [shape = 's32[1]{0}', space=sflag, size = 0x4, scoped, tag = 'scoped memory for tpu_custom_call.1']
    #allocation10 [shape = 'u8[12288]{0}', space=vmem, size = 0x3000, scoped, tag = 'output window, operand 0, single buffered']
    %10 = vsyncpa [#allocation3], 0
    %11 = vsyncpa [#allocation6], 0
    %12 = vsyncpa [#allocation9], 0
    %13 = vsyncpa [#allocation4], 0
    // Predicated region
    $region2: #{tpu_custom_call.1} parent=1 // pred_check
      _
    $region3: #{tpu_custom_call.1} parent=1 // pred_check_branch
      %15 = sbr.rel (0) target = $region5
    $region4: #{tpu_custom_call.1} parent=1 // pred_region
      %s17 = ssub.s32 384, 384
      %18 = vsyncadd [#allocation3], %s17
      %s19 = sshll.u32 [#allocation2], 4
      %s20 = int_to_ptr.vmem [resolvable:$true] %s19
      %25 = dma.hbm_to_vmem [thread:$0]  %s0, 384, %s20, [#allocation3], 128, 128, 8
    $region5: #{tpu_custom_call.1} parent=1 // pred_fallthru
      _
    // Predicated region
    $region6: #{tpu_custom_call.1} parent=1 // pred_check
      _
    $region7: #{tpu_custom_call.1} parent=1 // pred_check_branch
      %27 = sbr.rel (0) target = $region9
    $region8: #{tpu_custom_call.1} parent=1 // pred_region
      %s29 = ssub.s32 1024, 1024
      %30 = vsyncadd [#allocation6], %s29
      %s31 = sshll.u32 [#allocation5], 4
      %s32 = int_to_ptr.vmem [resolvable:$true] %s31
      %37 = dma.hbm_to_vmem [thread:$0]  %s1, 1024, %s32, [#allocation6], 128, 128, 8
    $region9: #{tpu_custom_call.1} parent=1 // pred_fallthru
      _
    // Predicated region
    $region10: #{tpu_custom_call.1} parent=1 // pred_check
      _
    $region11: #{tpu_custom_call.1} parent=1 // pred_check_branch
      %39 = sbr.rel (0) target = $region13
    $region12: #{tpu_custom_call.1} parent=1 // pred_region
      %s41 = ssub.s32 2560, 2560
      %42 = vsyncadd [#allocation6], %s41
      %s43 = sshll.u32 [#allocation7], 4
      %s44 = int_to_ptr.vmem [resolvable:$true] %s43
      %49 = dma.hbm_to_vmem [thread:$0]  %s2, 2560, %s44, [#allocation6], 128, 128, 8
    $region13: #{tpu_custom_call.1} parent=1 // pred_fallthru
      _
    // Predicated region
    $region14: #{tpu_custom_call.1} parent=1 // pred_check
      _
    $region15: #{tpu_custom_call.1} parent=1 // pred_check_branch
      %51 = sbr.rel (0) target = $region17
    $region16: #{tpu_custom_call.1} parent=1 // pred_region
      %s53 = ssub.s32 512, 512
      %54 = vsyncadd [#allocation9], %s53
      %s55 = sshll.u32 [#allocation8], 4
      %s56 = int_to_ptr.vmem [resolvable:$true] %s55
      %61 = dma.hbm_to_vmem [thread:$0]  %s3, 512, %s56, [#allocation9], 128, 128, 8
    $region17: #{tpu_custom_call.1} parent=1 // pred_fallthru
      _
    // Predicated region
    $region18: #{tpu_custom_call.1} parent=1 // pred_check
      _
    $region19: #{tpu_custom_call.1} parent=1 // pred_check_branch
      %63 = sbr.rel (0) target = $region21
    $region20: #{tpu_custom_call.1} parent=1 // pred_region
      _
    $region21: #{tpu_custom_call.1} parent=1 // pred_fallthru
      _
    // Predicated region
    $region22: #{tpu_custom_call.1} parent=1 // pred_check
      _
    $region23: #{tpu_custom_call.1} parent=1 // pred_check_branch
      %65 = sbr.rel (0) target = $region25
    $region24: #{tpu_custom_call.1} parent=1 // pred_region
      %66 = dma.done [#allocation3], 384
    $region25: #{tpu_custom_call.1} parent=1 // pred_fallthru
      _
    // Predicated region
    $region26: #{tpu_custom_call.1} parent=1 // pred_check
      _
    $region27: #{tpu_custom_call.1} parent=1 // pred_check_branch
      %68 = sbr.rel (0) target = $region29
    $region28: #{tpu_custom_call.1} parent=1 // pred_region
      %69 = dma.done [#allocation6], 1024
    $region29: #{tpu_custom_call.1} parent=1 // pred_fallthru
      _
    // Predicated region
    $region30: #{tpu_custom_call.1} parent=1 // pred_check
      _
    $region31: #{tpu_custom_call.1} parent=1 // pred_check_branch
      %71 = sbr.rel (0) target = $region33
    $region32: #{tpu_custom_call.1} parent=1 // pred_region
      %72 = dma.done [#allocation6], 2560
    $region33: #{tpu_custom_call.1} parent=1 // pred_fallthru
      _
    // Predicated region
    $region34: #{tpu_custom_call.1} parent=1 // pred_check
      _
    $region35: #{tpu_custom_call.1} parent=1 // pred_check_branch
      %74 = sbr.rel (0) target = $region37
    $region36: #{tpu_custom_call.1} parent=1 // pred_region
      %75 = dma.done [#allocation9], 512
    $region37: #{tpu_custom_call.1} parent=1 // pred_fallthru
      _
    %v76 = vld [vmem:[%s4] sm:$0x1]
    %v77 = vld [vmem:[%s4 + $0x1] sm:$0x1]
    %v78 = vld [vmem:[%s4 + $0x2] sm:$0x1]
    %v79 = vld [vmem:[%s4 + $0x3] sm:$0x1]
    %v80 = vld [vmem:[#allocation2] sm:$0xff]
    %v81 = vld [vmem:[#allocation2 + $0x8] sm:$0xff]
    %v82 = vld [vmem:[#allocation2 + $0x10] sm:$0xff]
    %v83 = vld [vmem:[#allocation5] sm:$0xff]
    %v84 = vld [vmem:[#allocation5 + $0x8] sm:$0xff]
    %v85 = vld [vmem:[#allocation5 + $0x10] sm:$0xff]
    %v86 = vld [vmem:[#allocation5 + $0x18] sm:$0xff]
    %v87 = vld [vmem:[#allocation5 + $0x20] sm:$0xff]
    %v88 = vld [vmem:[#allocation5 + $0x28] sm:$0xff]
    %v89 = vld [vmem:[#allocation5 + $0x30] sm:$0xff]
    %v90 = vld [vmem:[#allocation5 + $0x38] sm:$0xff]
    %v91 = vlaneseq
    %v92 = vshrl.u32 %v91, 7
    %v93 = vsub.s32 0, %v92
    %v94 = vrot.slane %v76, %v93
    %vm95 = vcmask 523264
    %v97 = vsel %vm95, %v80, 0
    %v100 = vsel %vm95, %v81, 0
    %v103 = vsel %vm95, %v82, 0
    %105 = vmatprep.subr.mxu0 0.0
    %106 = vmatpush1.msra.mxu0 %v83
    %107 = vmatprep.subr.mxu0 0.0
    %108 = vmatpush1.msra.mxu0 %v84
    %109 = vmatprep.subr.mxu0 0.0
    %110 = vmatpush1.msra.mxu0 %v85
    %111 = vmatprep.subr.mxu0 0.0
    %112 = vmatpush1.msra.mxu0 %v86
    %113 = vmatprep.subr.mxu0 0.0
    %114 = vmatpush1.msra.mxu0 %v87
    %115 = vmatprep.subr.mxu0 0.0
    %116 = vmatpush1.msra.mxu0 %v88
    %117 = vmatprep.subr.mxu0 0.0
    %118 = vmatpush1.msra.mxu0 %v89
    %119 = vmatprep.subr.mxu0 0.0
    %120 = vmatpush1.msra.mxu0 %v90
    %121 = vmatprep.subr.mxu0 0.0
    %122 = vmatpush1.msra.mxu0 0.0
    %123 = vmatprep.subr.mxu0 0.0
    %124 = vmatpush1.msra.mxu0 0.0
    %125 = vmatprep.subr.mxu0 0.0
    %126 = vmatpush1.msra.mxu0 0.0
    %127 = vmatprep.subr.mxu0 0.0
    %128 = vmatpush1.msra.mxu0 0.0
    %129 = vmatprep.subr.mxu0 0.0
    %130 = vmatpush1.msra.mxu0 0.0
    %131 = vmatprep.subr.mxu0 0.0
    %132 = vmatpush1.msra.mxu0 0.0
    %133 = vmatprep.subr.mxu0 0.0
    %134 = vmatpush1.msra.mxu0 0.0
    %135 = vmatprep.subr.mxu0 0.0
    %136 = vmatpush1.msra.mxu0 0.0
    %137 = vmatprep.subr.mxu0 0.0
    %138 = vmatpush1.msra.mxu0 0.0
    %139 = vmatprep.subr.mxu0 0.0
    %140 = vmatpush1.msra.mxu0 0.0
    %141 = vmatprep.subr.mxu0 0.0
    %142 = vmatpush1.msra.mxu0 0.0
    %143 = vmatprep.subr.mxu0 0.0
    %144 = vmatpush1.msra.mxu0 0.0
    %145 = vmatprep.subr.mxu0 0.0
    %146 = vmatpush1.msra.mxu0 0.0
    %147 = vmatprep.subr.mxu0 0.0
    %148 = vmatpush1.msra.mxu0 0.0
    %149 = vmatprep.subr.mxu0 0.0
    %150 = vmatpush1.msra.mxu0 0.0
    %151 = vmatprep.subr.mxu0 0.0
    %152 = vmatpush1.msra.mxu0 0.0
    %153 = vmatprep.subr.mxu0 0.0
    %154 = vmatpush1.msra.mxu0 0.0
    %155 = vmatprep.subr.mxu0 0.0
    %156 = vmatpush1.msra.mxu0 0.0
    %157 = vmatprep.subr.mxu0 0.0
    %158 = vmatpush1.msra.mxu0 0.0
    %159 = vmatprep.subr.mxu0 0.0
    %160 = vmatpush1.msra.mxu0 0.0
    %161 = vmatprep.subr.mxu0 0.0
    %162 = vmatpush1.msra.mxu0 0.0
    %163 = vmatprep.subr.mxu0 0.0
    %164 = vmatpush1.msra.mxu0 0.0
    %165 = vmatprep.subr.mxu0 0.0
    %166 = vmatpush1.msra.mxu0 0.0
    %167 = vmatprep.subr.mxu0 0.0
    %168 = vmatpush1.msra.mxu0 0.0
    %169 = vmatprep.mubr.f32.mxu0 0.0
    %170 = vmatmul.mubr.f32.gmra.mrb[0].mxu0 %v97
    %v171 = vpop.f32.mrb[0].mxu0
    %v172 = vadd.f32 %v94, %v171
    %v173 = vpop.f32.mrb[0].mxu0
    %174 = vmatprep.mubr.f32.mxu0 0.0
    %175 = vmatmul.mubr.f32.gmra.mrb[0].mxu0 %v100
    %v176 = vpop.f32.mrb[0].mxu0
    %v177 = vadd.f32 %v94, %v176
    %v178 = vpop.f32.mrb[0].mxu0
    %179 = vmatprep.mubr.f32.mxu0 0.0
    %180 = vmatmul.mubr.f32.gmra.mrb[0].mxu0 %v103
    %v181 = vpop.f32.mrb[0].mxu0
    %v182 = vadd.f32 %v94, %v181
    %v183 = vpop.f32.mrb[0].mxu0
    %184 = vdwg.mxu0
    %185 = vst [vmem:[#allocation10] sm:$0xff] %v172
    %186 = vst [vmem:[#allocation10 + $0x8] sm:$0xff] %v177
    %v187 = vld [vmem:[#allocation7] sm:$0xff]
    %v188 = vld [vmem:[#allocation7 + $0x8] sm:$0xff]
    %v189 = vld [vmem:[#allocation7 + $0x10] sm:$0xff]
    %v190 = vld [vmem:[#allocation7 + $0x18] sm:$0xff]
    %v191 = vld [vmem:[#allocation7 + $0x20] sm:$0xff]
    %v192 = vld [vmem:[#allocation7 + $0x28] sm:$0xff]
    %v193 = vld [vmem:[#allocation7 + $0x30] sm:$0xff]
    %v194 = vld [vmem:[#allocation7 + $0x38] sm:$0xff]
    %v195 = vld [vmem:[#allocation7 + $0x40] sm:$0xff]
    %v196 = vld [vmem:[#allocation7 + $0x48] sm:$0xff]
    %v197 = vld [vmem:[#allocation7 + $0x50] sm:$0xff]
    %v198 = vld [vmem:[#allocation7 + $0x58] sm:$0xff]
    %v199 = vld [vmem:[#allocation7 + $0x60] sm:$0xff]
    %v200 = vld [vmem:[#allocation7 + $0x68] sm:$0xff]
    %v201 = vld [vmem:[#allocation7 + $0x70] sm:$0xff]
    %v202 = vld [vmem:[#allocation7 + $0x78] sm:$0xff]
    %v203 = vld [vmem:[#allocation7 + $0x80] sm:$0xff]
    %v204 = vld [vmem:[#allocation7 + $0x88] sm:$0xff]
    %v205 = vld [vmem:[#allocation7 + $0x90] sm:$0xff]
    %v206 = vld [vmem:[#allocation7 + $0x98] sm:$0xff]
    %v207 = vlaneseq
    %v208 = vshrl.u32 %v207, 7
    %v209 = vsub.s32 0, %v208
    %v210 = vrot.slane %v77, %v209
    %211 = vmatprep.subr.mxu0 0.0
    %212 = vmatpush1.msra.mxu0 %v187
    %213 = vmatprep.subr.mxu0 0.0
    %214 = vmatpush1.msra.mxu0 %v188
    %215 = vmatprep.subr.mxu0 0.0
    %216 = vmatpush1.msra.mxu0 %v189
    %217 = vmatprep.subr.mxu0 0.0
    %218 = vmatpush1.msra.mxu0 %v190
    %219 = vmatprep.subr.mxu0 0.0
    %220 = vmatpush1.msra.mxu0 %v191
    %221 = vmatprep.subr.mxu0 0.0
    %222 = vmatpush1.msra.mxu0 %v192
    %223 = vmatprep.subr.mxu0 0.0
    %224 = vmatpush1.msra.mxu0 %v193
    %225 = vmatprep.subr.mxu0 0.0
    %226 = vmatpush1.msra.mxu0 %v194
    %227 = vmatprep.subr.mxu0 0.0
    %228 = vmatpush1.msra.mxu0 %v195
    %229 = vmatprep.subr.mxu0 0.0
    %230 = vmatpush1.msra.mxu0 %v196
    %231 = vmatprep.subr.mxu0 0.0
    %232 = vmatpush1.msra.mxu0 %v197
    %233 = vmatprep.subr.mxu0 0.0
    %234 = vmatpush1.msra.mxu0 %v198
    %235 = vmatprep.subr.mxu0 0.0
    %236 = vmatpush1.msra.mxu0 %v199
    %237 = vmatprep.subr.mxu0 0.0
    %238 = vmatpush1.msra.mxu0 %v200
    %239 = vmatprep.subr.mxu0 0.0
    %240 = vmatpush1.msra.mxu0 %v201
    %241 = vmatprep.subr.mxu0 0.0
    %242 = vmatpush1.msra.mxu0 %v202
    %243 = vmatprep.subr.mxu0 0.0
    %244 = vmatpush1.msra.mxu0 0.0
    %245 = vmatprep.subr.mxu0 0.0
    %246 = vmatpush1.msra.mxu0 0.0
    %247 = vmatprep.subr.mxu0 0.0
    %248 = vmatpush1.msra.mxu0 0.0
    %249 = vmatprep.subr.mxu0 0.0
    %250 = vmatpush1.msra.mxu0 0.0
    %251 = vmatprep.subr.mxu0 0.0
    %252 = vmatpush1.msra.mxu0 0.0
    %253 = vmatprep.subr.mxu0 0.0
    %254 = vmatpush1.msra.mxu0 0.0
    %255 = vmatprep.subr.mxu0 0.0
    %256 = vmatpush1.msra.mxu0 0.0
    %257 = vmatprep.subr.mxu0 0.0
    %258 = vmatpush1.msra.mxu0 0.0
    %259 = vmatprep.subr.mxu0 0.0
    %260 = vmatpush1.msra.mxu0 0.0
    %261 = vmatprep.subr.mxu0 0.0
    %262 = vmatpush1.msra.mxu0 0.0
    %263 = vmatprep.subr.mxu0 0.0
    %264 = vmatpush1.msra.mxu0 0.0
    %265 = vmatprep.subr.mxu0 0.0
    %266 = vmatpush1.msra.mxu0 0.0
    %267 = vmatprep.subr.mxu0 0.0
    %268 = vmatpush1.msra.mxu0 0.0
    %269 = vmatprep.subr.mxu0 0.0
    %270 = vmatpush1.msra.mxu0 0.0
    %271 = vmatprep.subr.mxu0 0.0
    %272 = vmatpush1.msra.mxu0 0.0
    %273 = vmatprep.subr.mxu0 0.0
    %274 = vmatpush1.msra.mxu0 0.0
    %275 = vmatprep.mubr.f32.mxu0 0.0
    %276 = vmatmul.mubr.f32.gmra.mrb[0].mxu0 %v182
    %v277 = vpop.f32.mrb[0].mxu0
    %v278 = vadd.f32 %v210, %v277
    %v279 = vpop.f32.mrb[0].mxu0
    %280 = vdwg.mxu0
    %v281 = vlaneseq
    %v282 = vshrl.u32 %v281, 7
    %v283 = vsub.s32 0, %v282
    %v284 = vrot.slane %v78, %v283
    %vm285 = vcmask 261120
    %v287 = vsel %vm285, 0.0, 0
    %289 = vmatprep.subr.mxu0 0.0
    %290 = vmatpush1.msra.mxu0 %v203
    %291 = vmatprep.subr.mxu0 0.0
    %292 = vmatpush1.msra.mxu0 %v204
    %293 = vmatprep.subr.mxu0 0.0
    %294 = vmatpush1.msra.mxu0 %v205
    %295 = vmatprep.subr.mxu0 0.0
    %296 = vmatpush1.msra.mxu0 %v206
    %297 = vmatprep.subr.mxu0 0.0
    %298 = vmatpush1.msra.mxu0 0.0
    %299 = vmatprep.subr.mxu0 0.0
    %300 = vmatpush1.msra.mxu0 0.0
    %301 = vmatprep.subr.mxu0 0.0
    %302 = vmatpush1.msra.mxu0 0.0
    %303 = vmatprep.subr.mxu0 0.0
    %304 = vmatpush1.msra.mxu0 0.0
    %305 = vmatprep.subr.mxu0 0.0
    %306 = vmatpush1.msra.mxu0 0.0
    %307 = vmatprep.subr.mxu0 0.0
    %308 = vmatpush1.msra.mxu0 0.0
    %309 = vmatprep.subr.mxu0 0.0
    %310 = vmatpush1.msra.mxu0 0.0
    %311 = vmatprep.subr.mxu0 0.0
    %312 = vmatpush1.msra.mxu0 0.0
    %313 = vmatprep.subr.mxu0 0.0
    %314 = vmatpush1.msra.mxu0 0.0
    %315 = vmatprep.subr.mxu0 0.0
    %316 = vmatpush1.msra.mxu0 0.0
    %317 = vmatprep.subr.mxu0 0.0
    %318 = vmatpush1.msra.mxu0 0.0
    %319 = vmatprep.subr.mxu0 0.0
    %320 = vmatpush1.msra.mxu0 0.0
    %321 = vmatprep.subr.mxu0 0.0
    %322 = vmatpush1.msra.mxu0 0.0
    %323 = vmatprep.subr.mxu0 0.0
    %324 = vmatpush1.msra.mxu0 0.0
    %325 = vmatprep.subr.mxu0 0.0
    %326 = vmatpush1.msra.mxu0 0.0
    %327 = vmatprep.subr.mxu0 0.0
    %328 = vmatpush1.msra.mxu0 0.0
    %329 = vmatprep.subr.mxu0 0.0
    %330 = vmatpush1.msra.mxu0 0.0
    %331 = vmatprep.subr.mxu0 0.0
    %332 = vmatpush1.msra.mxu0 0.0
    %333 = vmatprep.subr.mxu0 0.0
    %334 = vmatpush1.msra.mxu0 0.0
    %335 = vmatprep.subr.mxu0 0.0
    %336 = vmatpush1.msra.mxu0 0.0
    %337 = vmatprep.subr.mxu0 0.0
    %338 = vmatpush1.msra.mxu0 0.0
    %339 = vmatprep.subr.mxu0 0.0
    %340 = vmatpush1.msra.mxu0 0.0
    %341 = vmatprep.subr.mxu0 0.0
    %342 = vmatpush1.msra.mxu0 0.0
    %343 = vmatprep.subr.mxu0 0.0
    %344 = vmatpush1.msra.mxu0 0.0
    %345 = vmatprep.subr.mxu0 0.0
    %346 = vmatpush1.msra.mxu0 0.0
    %347 = vmatprep.subr.mxu0 0.0
    %348 = vmatpush1.msra.mxu0 0.0
    %349 = vmatprep.subr.mxu0 0.0
    %350 = vmatpush1.msra.mxu0 0.0
    %351 = vmatprep.subr.mxu0 0.0
    %352 = vmatpush1.msra.mxu0 0.0
    %353 = vmatprep.mubr.f32.mxu0 0.0
    %354 = vmatmul.mubr.f32.gmra.mrb[0].mxu0 %v287
    %v355 = vpop.f32.mrb[0].mxu0
    %v356 = vadd.f32 %v284, %v355
    %v357 = vpop.f32.mrb[0].mxu0
    %358 = vdwg.mxu0
    %v359 = vadd.f32 %v278, %v356
    %v360 = vxor.u32 %v359, 2147483648
    %v361 = vmul.f32 %v360, 1.442695
    %v362 = vpow.pop %v361
    %v363 = vadd.f32 %v362, 1.0
    %v364 = vrcp.pop %v363
    %v365 = vmul.f32 1.0, %v364
    %367 = vrot.lane.b32.xlu0 %v356, 64
    %v368 = vpop.permute.xlu0 %367
    %v370 = vmul.f32 %v365, %v368
    %372 = vrot.lane.b32.xlu0 %v370, 64
    %v373 = vpop.permute.xlu0 %372
    %v375 = vadd.f32 %v278, %v373
    %v376 = vtanh.pop %v375
    %v377 = vsub.f32 1.0, %v365
    %379 = vrot.lane.b32.xlu0 %v376, 96
    %v380 = vpop.permute.xlu0 %379
    %v382 = vmul.f32 %v377, %v380
    %v383 = vmul.f32 %v365, 0.0
    %v384 = vadd.f32 %v382, %v383
    %386 = vrot.lane.b32.xlu0 %v384, 96
    %v387 = vpop.permute.xlu0 %386
    %v388 = vsel %vm285, %v387, 0
    %390 = vmatprep.subr.mxu0 0.0
    %391 = vmatpush1.msra.mxu0 %v203
    %392 = vmatprep.subr.mxu0 0.0
    %393 = vmatpush1.msra.mxu0 %v204
    %394 = vmatprep.subr.mxu0 0.0
    %395 = vmatpush1.msra.mxu0 %v205
    %396 = vmatprep.subr.mxu0 0.0
    %397 = vmatpush1.msra.mxu0 %v206
    %398 = vmatprep.subr.mxu0 0.0
    %399 = vmatpush1.msra.mxu0 0.0
    %400 = vmatprep.subr.mxu0 0.0
    %401 = vmatpush1.msra.mxu0 0.0
    %402 = vmatprep.subr.mxu0 0.0
    %403 = vmatpush1.msra.mxu0 0.0
    %404 = vmatprep.subr.mxu0 0.0
    %405 = vmatpush1.msra.mxu0 0.0
    %406 = vmatprep.subr.mxu0 0.0
    %407 = vmatpush1.msra.mxu0 0.0
    %408 = vmatprep.subr.mxu0 0.0
    %409 = vmatpush1.msra.mxu0 0.0
    %410 = vmatprep.subr.mxu0 0.0
    %411 = vmatpush1.msra.mxu0 0.0
    %412 = vmatprep.subr.mxu0 0.0
    %413 = vmatpush1.msra.mxu0 0.0
    %414 = vmatprep.subr.mxu0 0.0
    %415 = vmatpush1.msra.mxu0 0.0
    %416 = vmatprep.subr.mxu0 0.0
    %417 = vmatpush1.msra.mxu0 0.0
    %418 = vmatprep.subr.mxu0 0.0
    %419 = vmatpush1.msra.mxu0 0.0
    %420 = vmatprep.subr.mxu0 0.0
    %421 = vmatpush1.msra.mxu0 0.0
    %422 = vmatprep.subr.mxu0 0.0
    %423 = vmatpush1.msra.mxu0 0.0
    %424 = vmatprep.subr.mxu0 0.0
    %425 = vmatpush1.msra.mxu0 0.0
    %426 = vmatprep.subr.mxu0 0.0
    %427 = vmatpush1.msra.mxu0 0.0
    %428 = vmatprep.subr.mxu0 0.0
    %429 = vmatpush1.msra.mxu0 0.0
    %430 = vmatprep.subr.mxu0 0.0
    %431 = vmatpush1.msra.mxu0 0.0
    %432 = vmatprep.subr.mxu0 0.0
    %433 = vmatpush1.msra.mxu0 0.0
    %434 = vmatprep.subr.mxu0 0.0
    %435 = vmatpush1.msra.mxu0 0.0
    %436 = vmatprep.subr.mxu0 0.0
    %437 = vmatpush1.msra.mxu0 0.0
    %438 = vmatprep.subr.mxu0 0.0
    %439 = vmatpush1.msra.mxu0 0.0
    %440 = vmatprep.subr.mxu0 0.0
    %441 = vmatpush1.msra.mxu0 0.0
    %442 = vmatprep.subr.mxu0 0.0
    %443 = vmatpush1.msra.mxu0 0.0
    %444 = vmatprep.subr.mxu0 0.0
    %445 = vmatpush1.msra.mxu0 0.0
    %446 = vmatprep.subr.mxu0 0.0
    %447 = vmatpush1.msra.mxu0 0.0
    %448 = vmatprep.subr.mxu0 0.0
    %449 = vmatpush1.msra.mxu0 0.0
    %450 = vmatprep.subr.mxu0 0.0
    %451 = vmatpush1.msra.mxu0 0.0
    %452 = vmatprep.subr.mxu0 0.0
    %453 = vmatpush1.msra.mxu0 0.0
    %454 = vmatprep.mubr.f32.mxu0 0.0
    %455 = vmatmul.mubr.f32.gmra.mrb[0].mxu0 %v388
    %v456 = vpop.f32.mrb[0].mxu0
    %v457 = vadd.f32 %v284, %v456
    %v458 = vpop.f32.mrb[0].mxu0
    %459 = vdwg.mxu0
    %v461 = vrot.slane %v457, 6
    %v463 = vadd.f32 %v278, %v461
    %v464 = vxor.u32 %v463, 2147483648
    %v465 = vmul.f32 %v464, 1.442695
    %v466 = vpow.pop %v465
    %v467 = vadd.f32 %v466, 1.0
    %v468 = vrcp.pop %v467
    %v469 = vmul.f32 1.0, %v468
    %470 = vrot.lane.b32.xlu0 %v461, 64
    %v471 = vpop.permute.xlu0 %470
    %v473 = vmul.f32 %v469, %v471
    %475 = vrot.lane.b32.xlu0 %v473, 64
    %v476 = vpop.permute.xlu0 %475
    %v478 = vadd.f32 %v278, %v476
    %v479 = vtanh.pop %v478
    %v480 = vsub.f32 1.0, %v469
    %482 = vrot.lane.b32.xlu0 %v479, 96
    %v483 = vpop.permute.xlu0 %482
    %v485 = vmul.f32 %v480, %v483
    %v486 = vrot.slane %v384, 6
    %v488 = vmul.f32 %v469, %v486
    %v489 = vadd.f32 %v485, %v488
    %v491 = vrot.slane %v489, 2
    %492 = vrot.lane.b32.xlu0 %v491, 96
    %v493 = vpop.permute.xlu0 %492
    %v494 = vsel %vm285, %v493, 0
    %496 = vmatprep.subr.mxu0 0.0
    %497 = vmatpush1.msra.mxu0 %v203
    %498 = vmatprep.subr.mxu0 0.0
    %499 = vmatpush1.msra.mxu0 %v204
    %500 = vmatprep.subr.mxu0 0.0
    %501 = vmatpush1.msra.mxu0 %v205
    %502 = vmatprep.subr.mxu0 0.0
    %503 = vmatpush1.msra.mxu0 %v206
    %504 = vmatprep.subr.mxu0 0.0
    %505 = vmatpush1.msra.mxu0 0.0
    %506 = vmatprep.subr.mxu0 0.0
    %507 = vmatpush1.msra.mxu0 0.0
    %508 = vmatprep.subr.mxu0 0.0
    %509 = vmatpush1.msra.mxu0 0.0
    %510 = vmatprep.subr.mxu0 0.0
    %511 = vmatpush1.msra.mxu0 0.0
    %512 = vmatprep.subr.mxu0 0.0
    %513 = vmatpush1.msra.mxu0 0.0
    %514 = vmatprep.subr.mxu0 0.0
    %515 = vmatpush1.msra.mxu0 0.0
    %516 = vmatprep.subr.mxu0 0.0
    %517 = vmatpush1.msra.mxu0 0.0
    %518 = vmatprep.subr.mxu0 0.0
    %519 = vmatpush1.msra.mxu0 0.0
    %520 = vmatprep.subr.mxu0 0.0
    %521 = vmatpush1.msra.mxu0 0.0
    %522 = vmatprep.subr.mxu0 0.0
    %523 = vmatpush1.msra.mxu0 0.0
    %524 = vmatprep.subr.mxu0 0.0
    %525 = vmatpush1.msra.mxu0 0.0
    %526 = vmatprep.subr.mxu0 0.0
    %527 = vmatpush1.msra.mxu0 0.0
    %528 = vmatprep.subr.mxu0 0.0
    %529 = vmatpush1.msra.mxu0 0.0
    %530 = vmatprep.subr.mxu0 0.0
    %531 = vmatpush1.msra.mxu0 0.0
    %532 = vmatprep.subr.mxu0 0.0
    %533 = vmatpush1.msra.mxu0 0.0
    %534 = vmatprep.subr.mxu0 0.0
    %535 = vmatpush1.msra.mxu0 0.0
    %536 = vmatprep.subr.mxu0 0.0
    %537 = vmatpush1.msra.mxu0 0.0
    %538 = vmatprep.subr.mxu0 0.0
    %539 = vmatpush1.msra.mxu0 0.0
    %540 = vmatprep.subr.mxu0 0.0
    %541 = vmatpush1.msra.mxu0 0.0
    %542 = vmatprep.subr.mxu0 0.0
    %543 = vmatpush1.msra.mxu0 0.0
    %544 = vmatprep.subr.mxu0 0.0
    %545 = vmatpush1.msra.mxu0 0.0
    %546 = vmatprep.subr.mxu0 0.0
    %547 = vmatpush1.msra.mxu0 0.0
    %548 = vmatprep.subr.mxu0 0.0
    %549 = vmatpush1.msra.mxu0 0.0
    %550 = vmatprep.subr.mxu0 0.0
    %551 = vmatpush1.msra.mxu0 0.0
    %552 = vmatprep.subr.mxu0 0.0
    %553 = vmatpush1.msra.mxu0 0.0
    %554 = vmatprep.subr.mxu0 0.0
    %555 = vmatpush1.msra.mxu0 0.0
    %556 = vmatprep.subr.mxu0 0.0
    %557 = vmatpush1.msra.mxu0 0.0
    %558 = vmatprep.subr.mxu0 0.0
    %559 = vmatpush1.msra.mxu0 0.0
    %560 = vmatprep.mubr.f32.mxu0 0.0
    %561 = vmatmul.mubr.f32.gmra.mrb[0].mxu0 %v494
    %v562 = vpop.f32.mrb[0].mxu0
    %v563 = vadd.f32 %v284, %v562
    %v564 = vpop.f32.mrb[0].mxu0
    %565 = vdwg.mxu0
    %v567 = vrot.slane %v563, 4
    %v569 = vadd.f32 %v278, %v567
    %v570 = vxor.u32 %v569, 2147483648
    %v571 = vmul.f32 %v570, 1.442695
    %v572 = vpow.pop %v571
    %v573 = vadd.f32 %v572, 1.0
    %v574 = vrcp.pop %v573
    %v575 = vmul.f32 1.0, %v574
    %576 = vrot.lane.b32.xlu0 %v567, 64
    %v577 = vpop.permute.xlu0 %576
    %v579 = vmul.f32 %v575, %v577
    %581 = vrot.lane.b32.xlu0 %v579, 64
    %v582 = vpop.permute.xlu0 %581
    %v584 = vadd.f32 %v278, %v582
    %v585 = vtanh.pop %v584
    %v586 = vsub.f32 1.0, %v575
    %588 = vrot.lane.b32.xlu0 %v585, 96
    %v589 = vpop.permute.xlu0 %588
    %v591 = vmul.f32 %v586, %v589
    %v592 = vrot.slane %v489, 6
    %v594 = vmul.f32 %v575, %v592
    %v595 = vadd.f32 %v591, %v594
    %v597 = vrot.slane %v595, 4
    %598 = vrot.lane.b32.xlu0 %v597, 96
    %v599 = vpop.permute.xlu0 %598
    %v600 = vsel %vm285, %v599, 0
    %602 = vmatprep.subr.mxu0 0.0
    %603 = vmatpush1.msra.mxu0 %v203
    %604 = vmatprep.subr.mxu0 0.0
    %605 = vmatpush1.msra.mxu0 %v204
    %606 = vmatprep.subr.mxu0 0.0
    %607 = vmatpush1.msra.mxu0 %v205
    %608 = vmatprep.subr.mxu0 0.0
    %609 = vmatpush1.msra.mxu0 %v206
    %610 = vmatprep.subr.mxu0 0.0
    %611 = vmatpush1.msra.mxu0 0.0
    %612 = vmatprep.subr.mxu0 0.0
    %613 = vmatpush1.msra.mxu0 0.0
    %614 = vmatprep.subr.mxu0 0.0
    %615 = vmatpush1.msra.mxu0 0.0
    %616 = vmatprep.subr.mxu0 0.0
    %617 = vmatpush1.msra.mxu0 0.0
    %618 = vmatprep.subr.mxu0 0.0
    %619 = vmatpush1.msra.mxu0 0.0
    %620 = vmatprep.subr.mxu0 0.0
    %621 = vmatpush1.msra.mxu0 0.0
    %622 = vmatprep.subr.mxu0 0.0
    %623 = vmatpush1.msra.mxu0 0.0
    %624 = vmatprep.subr.mxu0 0.0
    %625 = vmatpush1.msra.mxu0 0.0
    %626 = vmatprep.subr.mxu0 0.0
    %627 = vmatpush1.msra.mxu0 0.0
    %628 = vmatprep.subr.mxu0 0.0
    %629 = vmatpush1.msra.mxu0 0.0
    %630 = vmatprep.subr.mxu0 0.0
    %631 = vmatpush1.msra.mxu0 0.0
    %632 = vmatprep.subr.mxu0 0.0
    %633 = vmatpush1.msra.mxu0 0.0
    %634 = vmatprep.subr.mxu0 0.0
    %635 = vmatpush1.msra.mxu0 0.0
    %636 = vmatprep.subr.mxu0 0.0
    %637 = vmatpush1.msra.mxu0 0.0
    %638 = vmatprep.subr.mxu0 0.0
    %639 = vmatpush1.msra.mxu0 0.0
    %640 = vmatprep.subr.mxu0 0.0
    %641 = vmatpush1.msra.mxu0 0.0
    %642 = vmatprep.subr.mxu0 0.0
    %643 = vmatpush1.msra.mxu0 0.0
    %644 = vmatprep.subr.mxu0 0.0
    %645 = vmatpush1.msra.mxu0 0.0
    %646 = vmatprep.subr.mxu0 0.0
    %647 = vmatpush1.msra.mxu0 0.0
    %648 = vmatprep.subr.mxu0 0.0
    %649 = vmatpush1.msra.mxu0 0.0
    %650 = vmatprep.subr.mxu0 0.0
    %651 = vmatpush1.msra.mxu0 0.0
    %652 = vmatprep.subr.mxu0 0.0
    %653 = vmatpush1.msra.mxu0 0.0
    %654 = vmatprep.subr.mxu0 0.0
    %655 = vmatpush1.msra.mxu0 0.0
    %656 = vmatprep.subr.mxu0 0.0
    %657 = vmatpush1.msra.mxu0 0.0
    %658 = vmatprep.subr.mxu0 0.0
    %659 = vmatpush1.msra.mxu0 0.0
    %660 = vmatprep.subr.mxu0 0.0
    %661 = vmatpush1.msra.mxu0 0.0
    %662 = vmatprep.subr.mxu0 0.0
    %663 = vmatpush1.msra.mxu0 0.0
    %664 = vmatprep.subr.mxu0 0.0
    %665 = vmatpush1.msra.mxu0 0.0
    %666 = vmatprep.mubr.f32.mxu0 0.0
    %667 = vmatmul.mubr.f32.gmra.mrb[0].mxu0 %v600
    %v668 = vpop.f32.mrb[0].mxu0
    %v669 = vadd.f32 %v284, %v668
    %v670 = vpop.f32.mrb[0].mxu0
    %671 = vdwg.mxu0
    %v673 = vrot.slane %v669, 2
    %v675 = vadd.f32 %v278, %v673
    %v676 = vxor.u32 %v675, 2147483648
    %v677 = vmul.f32 %v676, 1.442695
    %v678 = vpow.pop %v677
    %v679 = vadd.f32 %v678, 1.0
    %v680 = vrcp.pop %v679
    %v681 = vmul.f32 1.0, %v680
    %682 = vrot.lane.b32.xlu0 %v673, 64
    %v683 = vpop.permute.xlu0 %682
    %v685 = vmul.f32 %v681, %v683
    %687 = vrot.lane.b32.xlu0 %v685, 64
    %v688 = vpop.permute.xlu0 %687
    %v690 = vadd.f32 %v278, %v688
    %v691 = vtanh.pop %v690
    %v692 = vsub.f32 1.0, %v681
    %694 = vrot.lane.b32.xlu0 %v691, 96
    %v695 = vpop.permute.xlu0 %694
    %v697 = vmul.f32 %v692, %v695
    %v698 = vrot.slane %v595, 6
    %v700 = vmul.f32 %v681, %v698
    %v701 = vadd.f32 %v697, %v700
    %v702 = vld [vmem:[#allocation8] sm:$0xff]
    %v703 = vld [vmem:[#allocation8 + $0x8] sm:$0xff]
    %v704 = vld [vmem:[#allocation8 + $0x10] sm:$0xff]
    %v705 = vld [vmem:[#allocation8 + $0x18] sm:$0xff]
    %v706 = vlaneseq
    %v707 = vshrl.u32 %v706, 7
    %v708 = vsub.s32 0, %v707
    %v709 = vrot.slane %v79, %v708
    %v711 = vrot.slane %v701, 6
    %712 = vrot.lane.b32.xlu0 %v711, 96
    %v713 = vpop.permute.xlu0 %712
    %v714 = vsel %vm285, %v713, 0
    %716 = vmatprep.subr.mxu0 0.0
    %717 = vmatpush1.msra.mxu0 %v702
    %718 = vmatprep.subr.mxu0 0.0
    %719 = vmatpush1.msra.mxu0 %v703
    %720 = vmatprep.subr.mxu0 0.0
    %721 = vmatpush1.msra.mxu0 %v704
    %722 = vmatprep.subr.mxu0 0.0
    %723 = vmatpush1.msra.mxu0 %v705
    %724 = vmatprep.subr.mxu0 0.0
    %725 = vmatpush1.msra.mxu0 0.0
    %726 = vmatprep.subr.mxu0 0.0
    %727 = vmatpush1.msra.mxu0 0.0
    %728 = vmatprep.subr.mxu0 0.0
    %729 = vmatpush1.msra.mxu0 0.0
    %730 = vmatprep.subr.mxu0 0.0
    %731 = vmatpush1.msra.mxu0 0.0
    %732 = vmatprep.subr.mxu0 0.0
    %733 = vmatpush1.msra.mxu0 0.0
    %734 = vmatprep.subr.mxu0 0.0
    %735 = vmatpush1.msra.mxu0 0.0
    %736 = vmatprep.subr.mxu0 0.0
    %737 = vmatpush1.msra.mxu0 0.0
    %738 = vmatprep.subr.mxu0 0.0
    %739 = vmatpush1.msra.mxu0 0.0
    %740 = vmatprep.subr.mxu0 0.0
    %741 = vmatpush1.msra.mxu0 0.0
    %742 = vmatprep.subr.mxu0 0.0
    %743 = vmatpush1.msra.mxu0 0.0
    %744 = vmatprep.subr.mxu0 0.0
    %745 = vmatpush1.msra.mxu0 0.0
    %746 = vmatprep.subr.mxu0 0.0
    %747 = vmatpush1.msra.mxu0 0.0
    %748 = vmatprep.subr.mxu0 0.0
    %749 = vmatpush1.msra.mxu0 0.0
    %750 = vmatprep.subr.mxu0 0.0
    %751 = vmatpush1.msra.mxu0 0.0
    %752 = vmatprep.subr.mxu0 0.0
    %753 = vmatpush1.msra.mxu0 0.0
    %754 = vmatprep.subr.mxu0 0.0
    %755 = vmatpush1.msra.mxu0 0.0
    %756 = vmatprep.subr.mxu0 0.0
    %757 = vmatpush1.msra.mxu0 0.0
    %758 = vmatprep.subr.mxu0 0.0
    %759 = vmatpush1.msra.mxu0 0.0
    %760 = vmatprep.subr.mxu0 0.0
    %761 = vmatpush1.msra.mxu0 0.0
    %762 = vmatprep.subr.mxu0 0.0
    %763 = vmatpush1.msra.mxu0 0.0
    %764 = vmatprep.subr.mxu0 0.0
    %765 = vmatpush1.msra.mxu0 0.0
    %766 = vmatprep.subr.mxu0 0.0
    %767 = vmatpush1.msra.mxu0 0.0
    %768 = vmatprep.subr.mxu0 0.0
    %769 = vmatpush1.msra.mxu0 0.0
    %770 = vmatprep.subr.mxu0 0.0
    %771 = vmatpush1.msra.mxu0 0.0
    %772 = vmatprep.subr.mxu0 0.0
    %773 = vmatpush1.msra.mxu0 0.0
    %774 = vmatprep.subr.mxu0 0.0
    %775 = vmatpush1.msra.mxu0 0.0
    %776 = vmatprep.subr.mxu0 0.0
    %777 = vmatpush1.msra.mxu0 0.0
    %778 = vmatprep.subr.mxu0 0.0
    %779 = vmatpush1.msra.mxu0 0.0
    %780 = vmatprep.mubr.f32.mxu0 0.0
    %781 = vmatmul.mubr.f32.gmra.mrb[0].mxu0 %v714
    %v782 = vpop.f32.mrb[0].mxu0
    %v783 = vadd.f32 %v709, %v782
    %v784 = vpop.f32.mrb[0].mxu0
    %785 = vdwg.mxu0
    %786 = vst [vmem:[#allocation10 + $0x10] sm:$0x3] %v783
    // Predicated region
    $region38: #{tpu_custom_call.1} parent=1 // pred_check
      _
    $region39: #{tpu_custom_call.1} parent=1 // pred_check_branch
      %788 = sbr.rel (0) target = $region41
    $region40: #{tpu_custom_call.1} parent=1 // pred_region
      %s790 = ssub.s32 384, 384
      %791 = vsyncadd [#allocation4], %s790
      %s792 = sshll.u32 [#allocation10], 4
      %s793 = int_to_ptr.vmem [resolvable:$true] %s792
      %798 = dma.vmem_to_hbm [thread:$0]  %s793, 384, %s5, [#allocation4], 128, 128, 8
    $region41: #{tpu_custom_call.1} parent=1 // pred_fallthru
      _
    // Predicated region
    $region42: #{tpu_custom_call.1} parent=1 // pred_check
      _
    $region43: #{tpu_custom_call.1} parent=1 // pred_check_branch
      %800 = sbr.rel (0) target = $region45
    $region44: #{tpu_custom_call.1} parent=1 // pred_region
      %801 = dma.done [#allocation4], 384
    $region45: #{tpu_custom_call.1} parent=1 // pred_fallthru
      _
    %802 = vsyncpa [#allocation3], 1
    %803 = vsyncpa [#allocation6], 1
    %804 = vsyncpa [#allocation9], 1
    %805 = vsyncpa [#allocation4], 1

</llo_original>
